<compile_context>
chip_gen: v7x
topology: tpu7x:2x2x1
jax: 0.10.0
libtpu: 0.0.40
codegen_flags: <defaults>
</compile_context>

<pallas_src>
import jax
import jax.numpy as jnp
from jax import lax
from jax.experimental import pallas as pl
from jax.experimental.pallas import tpu as pltpu


# --------------------------------------------------------------------------- #
# tiling helpers
# --------------------------------------------------------------------------- #
def _pick_tile(total, pref, quantum):
    """Largest multiple of `quantum` dividing `total`, <= pref; else `total`."""
    if total <= quantum:
        return total
    t = (min(pref, total) // quantum) * quantum
    while t >= quantum:
        if total % t == 0:
            return t
        t -= quantum
    return total


def _default_tiles(HW, batch, sds_itemsize):
    """Generation-safe defaults: lane tile up to 2048; sublane tile sized from
    a ~24 MiB live-VMEM budget (sds double-buffer + one f32 score + one f32
    product temp), targeting ~1M elements per (tile_i, tile_j) tile."""
    tile_j = _pick_tile(HW, 2048, 128)
    # v7x megacore: keep batch * (HW // tile_j) >= 2 so both TensorCores get
    # work.  Near no-op on single-TC v5e/v6e, so never shrink further there.
    while (batch * (HW // tile_j) < 2 and tile_j > 128
           and (tile_j // 2) % 128 == 0 and HW % (tile_j // 2) == 0):
        tile_j //= 2
    budget = 24 * 1024 * 1024
    per_row = (2 * sds_itemsize + 8) * tile_j
    max_ti = max(16, (budget // per_row) // 16 * 16)
    tile_i = _pick_tile(HW, min(max_ti, 2048), 16)
    return tile_i, tile_j


def _vmem_limit_bytes(tile_i, tile_j, C, sds_itemsize, temp_itemsize):
    need = (2 * sds_itemsize * tile_i * tile_j        # sds double-buffer
            + 2 * 4 * tile_i * tile_j                 # f32 score + product temp
            + 2 * 4 * temp_itemsize * tile_i * C      # fine temps double-buffer
            + 2 * temp_itemsize * C * tile_j          # key double-buffer
            + 2 * 4 * 10 * tile_j                     # out double-buffer
            + (1 << 20))                              # slack
    # Cap at 48 MiB: safe on v7x (64 MiB physical), plenty for v5e/v6e (128).
    return int(min(max(2 * need, 32 << 20), 48 << 20))


# --------------------------------------------------------------------------- #
# get_key: 1x1 conv (channel matmul) + L2 normalization over channels
# --------------------------------------------------------------------------- #
def _get_key_kernel(x_ref, w_ref, b_ref, key_ref):
    x = x_ref[...]                                           # (Cin, tile_j)
    w = w_ref[...]                                           # (Cout, Cin)
    y = jnp.dot(w, x, preferred_element_type=jnp.float32) + b_ref[...]
    # rsqrt on the EUP (own VLIW slot) + eps: zero-norm pixels -> 0, not NaN.
    inv_norm = lax.rsqrt(jnp.sum(y * y, axis=0, keepdims=True) + 1e-12)
    key_ref[...] = y * inv_norm


def get_key(x, weight, bias, *, tile_j=None):
    """x: (B, Cin, H, W) NCHW -> L2-normalized key (B, Cout, H, W)."""
    B, Cin, H, W = x.shape
    Cout = weight.shape[0]
    HW = H * W
    if tile_j is None:
        tile_j = _pick_tile(HW, 2048, 128)    # memory bound: big lane tiles
    assert HW % tile_j == 0 and (tile_j % 128 == 0 or tile_j == HW), tile_j

    x2 = x.reshape(B, Cin, HW).astype(jnp.float32)
    w2 = weight.reshape(Cout, Cin).astype(jnp.float32)
    b2 = bias.reshape(Cout, 1).astype(jnp.float32)

    key = pl.pallas_call(
        _get_key_kernel,
        out_shape=jax.ShapeDtypeStruct((B, Cout, HW), jnp.float32),
        grid=(B, HW // tile_j),
        in_specs=[
            pl.BlockSpec((None, Cin, tile_j), lambda b, j: (b, 0, j)),
            pl.BlockSpec((Cout, Cin), lambda b, j: (0, 0)),
            pl.BlockSpec((Cout, 1), lambda b, j: (0, 0)),
        ],
        out_specs=pl.BlockSpec((None, Cout, tile_j), lambda b, j: (b, 0, j)),
        compiler_params=pltpu.CompilerParams(
            dimension_semantics=("parallel", "parallel")),
    )(x2, w2, b2)
    return key.reshape(B, Cout, H, W)


# --------------------------------------------------------------------------- #
# Matcher.forward
# --------------------------------------------------------------------------- #
def _matcher_kernel(key_ref, fine_ref, coarse_ref, sds_ref, out_ref):
    i = pl.program_id(2)
    n_lanes = out_ref.shape[1]

    @pl.when(i == 0)
    def _init():
        out_ref[0:4, :] = jnp.full((4, n_lanes), -jnp.inf, out_ref.dtype)

    key = key_ref[...]            # (C, tile_j)   bf16
    sds = sds_ref[...]            # (tile_i, tile_j) native dtype (no pre-cast)

    # Per-template dot + immediate row-max: only one (tile_i, tile_j) f32
    # intermediate is live at a time (fits v7x's 64 MiB VMEM with big tiles).
    def row_max(t, modulate):
        s = jnp.dot(fine_ref[t], key, preferred_element_type=jnp.float32)
        if modulate:
            s = s * sds           # upcast (if sds is bf16) fuses into the mul
        return jnp.max(s, axis=0, keepdims=True)

    new_max = jnp.concatenate(
        [row_max(0, False), row_max(1, False),
         row_max(2, True), row_max(3, True)], axis=0)        # (4, tile_j)

    # Single coalesced (4, tile_j) RMW instead of four 1-sublane stores.
    out_ref[0:4, :] = jnp.maximum(out_ref[0:4, :], new_max)

    @pl.when(i == pl.num_programs(2) - 1)
    def _finalize():
        out_ref[4:10, :] = jnp.dot(coarse_ref[...], key,
                                   preferred_element_type=jnp.float32)


def stack_fine(state, dtype=jnp.bfloat16):
    """Pre-stack the 4 fine templates (global bg/fg, local bg/fg): (B, 4, HW, C).
    Do this once outside the hot path; matcher_forward also accepts it directly."""
    return jnp.stack(
        [state['global'][0], state['global'][1],
         state['local'][0], state['local'][1]], axis=1).astype(dtype)


def stack_coarse(state, dtype=jnp.bfloat16):
    """Pre-stack the 6 coarse templates (overall/short/long x bg/fg): (B, 6, C)."""
    return jnp.concatenate(
        [state['overall'][0], state['overall'][1],
         state['short'][0], state['short'][1],
         state['long'][0], state['long'][1]], axis=1).astype(dtype)


def matcher_forward(key, sds, state=None, *, fine=None, coarse=None,
                    tile_i=None, tile_j=None, temp_dtype=jnp.bfloat16,
                    vmem_limit_bytes=None):
    """key: (B, C, H, W); sds: (B, HW, H, W); returns (B, 10, H, W)."""
    B, C, H, W = key.shape
    HW = H * W

    # Dominant HBM stream: keep sds in its native dtype (no extra cast pass).
    sds2 = sds.reshape(B, HW, HW)
    if fine is None:
        fine = stack_fine(state, dtype=temp_dtype)
    if coarse is None:
        coarse = stack_coarse(state, dtype=temp_dtype)
    fine = fine.astype(temp_dtype)
    coarse = coarse.astype(temp_dtype)
    key2 = key.reshape(B, C, HW).astype(temp_dtype)

    ti_def, tj_def = _default_tiles(HW, B, sds2.dtype.itemsize)
    tile_j = tj_def if tile_j is None else tile_j
    tile_i = ti_def if tile_i is None else tile_i
    assert HW % tile_j == 0 and (tile_j % 128 == 0 or tile_j == HW), tile_j
    assert HW % tile_i == 0 and (tile_i % 16 == 0 or tile_i == HW), tile_i

    if vmem_limit_bytes is None:
        vmem_limit_bytes = _vmem_limit_bytes(
            tile_i, tile_j, C, sds2.dtype.itemsize,
            jnp.dtype(temp_dtype).itemsize)

    grid = (B, HW // tile_j, HW // tile_i)    # reduction (template rows) last

    out = pl.pallas_call(
        _matcher_kernel,
        out_shape=jax.ShapeDtypeStruct((B, 10, HW), jnp.float32),
        grid=grid,
        in_specs=[
            pl.BlockSpec((None, C, tile_j), lambda b, j, i: (b, 0, j)),        # key
            pl.BlockSpec((None, 4, tile_i, C), lambda b, j, i: (b, 0, i, 0)),  # fine temps
            pl.BlockSpec((None, 6, C), lambda b, j, i: (b, 0, 0)),             # coarse temps
            pl.BlockSpec((None, tile_i, tile_j), lambda b, j, i: (b, i, j)),   # sds
        ],
        # Block index independent of i -> VMEM-resident accumulator; no scratch.
        out_specs=pl.BlockSpec((None, 10, tile_j), lambda b, j, i: (b, 0, j)),
        compiler_params=pltpu.CompilerParams(
            dimension_semantics=("parallel", "parallel", "arbitrary"),
            vmem_limit_bytes=vmem_limit_bytes),
    )(key2, fine, coarse, sds2)
    return out.reshape(B, 10, H, W)


# --------------------------------------------------------------------------- #
# template helpers (plain JAX glue, cheap elementwise/reduction prep)
# --------------------------------------------------------------------------- #
def get_fine_temp(key, seg_16):
    B, C, H, W = key.shape
    HW = H * W
    k = key.reshape(B, C, HW).transpose(0, 2, 1)             # (B, HW, C)
    bg = k * seg_16[:, 0].reshape(B, HW, 1)
    fg = k * seg_16[:, 1].reshape(B, HW, 1)
    return [bg, fg]


def get_coarse_temp(fine_temp):
    bg_sum = jnp.clip(jnp.sum(fine_temp[0], axis=1, keepdims=True), 1e-07, None)
    fg_sum = jnp.clip(jnp.sum(fine_temp[1], axis=1, keepdims=True), 1e-07, None)
    bg = bg_sum / jnp.linalg.norm(bg_sum, axis=2, keepdims=True)
    fg = fg_sum / jnp.linalg.norm(fg_sum, axis=2, keepdims=True)
    return [bg, fg]


# --------------------------------------------------------------------------- #
# pure-JAX references
# --------------------------------------------------------------------------- #
def get_key_ref(x, weight, bias):
    B, Cin, H, W = x.shape
    Cout = weight.shape[0]
    y = jnp.einsum('oi,bihw->bohw', weight.reshape(Cout, Cin), x) \
        + bias.reshape(1, Cout, 1, 1)
    return y / jnp.linalg.norm(y, axis=1, keepdims=True)


def matcher_forward_ref(key, sds, state):
    B, C, H, W = key.shape
    HW = H * W
    key2 = key.reshape(B, C, HW)
    sds2 = sds.reshape(B, HW, HW)

    def fine(temp, mod=None):
        s = jnp.einsum('bic,bcj->bij', temp, key2)
        if mod is not None:
            s = s * mod
        return jnp.max(s, axis=1, keepdims=True)

    gbg = fine(state['global'][0]); gfg = fine(state['global'][1])
    lbg = fine(state['local'][0], sds2); lfg = fine(state['local'][1], sds2)

    def coarse(temp):
        return jnp.einsum('bic,bcj->bij', temp, key2)        # (B, 1, HW)

    pieces = [gbg, gfg, lbg, lfg,
              coarse(state['overall'][0]), coarse(state['overall'][1]),
              coarse(state['short'][0]), coarse(state['short'][1]),
              coarse(state['long'][0]), coarse(state['long'][1])]
    return jnp.concatenate(pieces, axis=1).reshape(B, 10, H, W)


# --------------------------------------------------------------------------- #
# main
# --------------------------------------------------------------------------- #
if __name__ == "__main__":
    B, in_c, out_c, H, W = 2, 4, 8, 16, 16
    HW = H * W

    root = jax.random.PRNGKey(0)
    k_w, k_x, k_seg, k_sds = jax.random.split(root, 4)

    # Conv(in_c, out_c, 1, 1, 0): kaiming_uniform weight, zero bias.
    fan_in = in_c  # 1x1 kernel
    bound = jnp.sqrt(6.0 / fan_in)
    conv_w = jax.random.uniform(k_w, (out_c, in_c, 1, 1), jnp.float32, -bound, bound)
    conv_b = jnp.zeros((out_c,), jnp.float32)

    # Matcher's short/long nn.Parameters are unused in the static forward.
    short_param = jnp.array([1.0, 1.0], jnp.float32)
    long_param = jnp.array([-1.0, -1.0], jnp.float32)

    # Inputs.
    x = jax.random.normal(k_x, (B, in_c, H, W), jnp.float32)
    seg_16 = jax.random.uniform(k_seg, (B, 2, H, W), jnp.float32)
    sds = jax.random.uniform(k_sds, (B, HW, H, W), jnp.float32)

    # key via the 1x1-conv Pallas kernel (default large lane tile).
    key = jax.block_until_ready(get_key(x, conv_w, conv_b))
    key_ref_val = get_key_ref(x, conv_w, conv_b)
    assert jnp.allclose(key, key_ref_val, atol=1e-4, rtol=1e-4), \
        f"get_key max abs err {jnp.max(jnp.abs(key - key_ref_val))}"

    fine_temp = get_fine_temp(key, seg_16)
    coarse_temp = get_coarse_temp(fine_temp)
    state = {
        'global': fine_temp,
        'local': fine_temp,
        'overall': coarse_temp,
        'short': coarse_temp,
        'long': coarse_temp,
    }

    # Pre-stacked templates (done once outside the hot path in real use).
    fine_stacked = stack_fine(state)
    coarse_stacked = stack_coarse(state)

    ref = matcher_forward_ref(key, sds, state)

    # 1) Default-tile path (HW=256 -> single tile per batch, grid (B,1,1)).
    out_default = jax.block_until_ready(
        matcher_forward(key, sds, fine=fine_stacked, coarse=coarse_stacked))
    assert out_default.shape == (B, 10, H, W)
    # bf16 templates/key on the MXU -> bf16-level tolerance.
    assert jnp.allclose(out_default, ref, atol=2e-2, rtol=2e-2), \
        f"default-tile max abs err {jnp.max(jnp.abs(out_default - ref))}"

    # 2) Explicit small tiles exercise the full 3-D grid (2, 2, 2) reduction.
    out_tiled = jax.block_until_ready(
        matcher_forward(key, sds, state, tile_i=128, tile_j=128))
    assert jnp.allclose(out_tiled, ref, atol=2e-2, rtol=2e-2), \
        f"tiled max abs err {jnp.max(jnp.abs(out_tiled - ref))}"

    print("KERNEL_OK")
</pallas_src>

<mosaic_0001>
module attributes {stable_mosaic.version = 11 : i64} {
  func.func @_get_key_kernel(%arg0: i32, %arg1: i32, %arg2: memref<1x4x256xf32, #tpu.memory_space<vmem>>, %arg3: memref<8x4xf32, #tpu.memory_space<vmem>>, %arg4: memref<8x1xf32, #tpu.memory_space<vmem>>, %arg5: memref<1x8x256xf32, #tpu.memory_space<vmem>>) attributes {dimension_semantics = [#tpu.dimension_semantics<parallel>, #tpu.dimension_semantics<parallel>], iteration_bounds = array<i64: 2, 1>, scalar_prefetch = 0 : i64, scratch_operands = 0 : i64, tpu.core_type = #tpu.core_type<tc>, window_params = [{transform_indices = @transform_0, window_bounds = array<i64: 1, 4, 256>}, {pipeline_mode = #tpu.pipeline_mode<synchronous>, transform_indices = @transform_1, window_bounds = array<i64: 8, 4>}, {pipeline_mode = #tpu.pipeline_mode<synchronous>, transform_indices = @transform_2, window_bounds = array<i64: 8, 1>}, {transform_indices = @transform_3, window_bounds = array<i64: 1, 8, 256>}]} {
    %c0 = arith.constant 0 : index
    %c0_0 = arith.constant 0 : index
    %c0_1 = arith.constant 0 : index
    %0 = vector.load %arg2[%c0, %c0_0, %c0_1] : memref<1x4x256xf32, #tpu.memory_space<vmem>>, vector<1x4x256xf32>
    %1 = vector.shape_cast %0 : vector<1x4x256xf32> to vector<4x256xf32>
    %c0_2 = arith.constant 0 : index
    %c0_3 = arith.constant 0 : index
    %2 = vector.load %arg3[%c0_2, %c0_3] : memref<8x4xf32, #tpu.memory_space<vmem>>, vector<8x4xf32>
    %cst = arith.constant dense<0.000000e+00> : vector<8x256xf32>
    %3 = tpu.matmul %2, %1, %cst {dimension_numbers = #tpu.dot_dimension_numbers<[1], [0], [0], [1], [0, 0, 1, 1], [], []>} : vector<8x4xf32>, vector<4x256xf32>, vector<8x256xf32> -> vector<8x256xf32>
    %c0_4 = arith.constant 0 : index
    %c0_5 = arith.constant 0 : index
    %4 = vector.load %arg4[%c0_4, %c0_5] : memref<8x1xf32, #tpu.memory_space<vmem>>, vector<8x1xf32>
    %5 = vector.broadcast %4 : vector<8x1xf32> to vector<8x256xf32>
    %6 = arith.addf %3, %5 : vector<8x256xf32>
    %7 = arith.mulf %6, %6 : vector<8x256xf32>
    %cst_6 = arith.constant dense<0.000000e+00> : vector<256xf32>
    %8 = vector.multi_reduction <add>, %7, %cst_6 [0] : vector<8x256xf32> to vector<256xf32>
    %9 = vector.shape_cast %8 : vector<256xf32> to vector<1x256xf32>
    %cst_7 = arith.constant 9.99999996E-13 : f32
    %10 = vector.broadcast %cst_7 : f32 to vector<1x256xf32>
    %11 = arith.addf %9, %10 : vector<1x256xf32>
    %12 = math.rsqrt %11 : vector<1x256xf32>
    %13 = vector.broadcast %12 : vector<1x256xf32> to vector<8x256xf32>
    %14 = arith.mulf %6, %13 : vector<8x256xf32>
    %c0_8 = arith.constant 0 : index
    %c0_9 = arith.constant 0 : index
    %c0_10 = arith.constant 0 : index
    %15 = vector.load %arg5[%c0_8, %c0_9, %c0_10] : memref<1x8x256xf32, #tpu.memory_space<vmem>>, vector<1x8x256xf32>
    %16 = vector.shape_cast %15 : vector<1x8x256xf32> to vector<8x256xf32>
    %17 = vector.shape_cast %14 : vector<8x256xf32> to vector<1x8x256xf32>
    tpu.vector_store %arg5[%c0_8, %c0_9, %c0_10], %17 {strides = array<i32>} : memref<1x8x256xf32, #tpu.memory_space<vmem>>, vector<1x8x256xf32>,
    return
  }
  func.func @transform_0(%arg0: i32, %arg1: i32) -> (i32, i32, i32) {
    %c0_i32 = arith.constant 0 : i32
    %c0_i32_0 = arith.constant 0 : i32
    return %arg0, %c0_i32, %arg1 : i32, i32, i32
  }
  func.func @transform_1(%arg0: i32, %arg1: i32) -> (i32, i32) {
    %c0_i32 = arith.constant 0 : i32
    %c0_i32_0 = arith.constant 0 : i32
    %c0_i32_1 = arith.constant 0 : i32
    return %c0_i32, %c0_i32_0 : i32, i32
  }
  func.func @transform_2(%arg0: i32, %arg1: i32) -> (i32, i32) {
    %c0_i32 = arith.constant 0 : i32
    %c0_i32_0 = arith.constant 0 : i32
    %c0_i32_1 = arith.constant 0 : i32
    return %c0_i32, %c0_i32_0 : i32, i32
  }
  func.func @transform_3(%arg0: i32, %arg1: i32) -> (i32, i32, i32) {
    %c0_i32 = arith.constant 0 : i32
    %c0_i32_0 = arith.constant 0 : i32
    return %arg0, %c0_i32, %arg1 : i32, i32, i32
  }
}

</mosaic_0001>

<llo_original>
// kernel: tpu_custom_call.1
$region0: #{tpu_custom_call.1}
  #allocation0 [shape = 'u32[]', space=smem, size = 0x4, offset = 0x4, fixed_abs, tag = 'smem constant byte address 0x4 - core index']
  #allocation1 [shape = 'u32[144,128]{1,0:T(1,128)}', space=vmem, size = 0x12000, scoped, tag = 'internal scratch']
  %s0 = inlined_call_operand.vmem [shape: f32[2,4,256], index: 0, kind: input, shape index: {}]
  %s1 = inlined_call_operand.vmem [shape: f32[8,4], index: 1, kind: input, shape index: {}]
  %s2 = inlined_call_operand.vmem [shape: f32[8,1], index: 2, kind: input, shape index: {}]
  %s3 = inlined_call_operand.hbm [shape: f32[2,8,256], index: 3, kind: output, shape index: {}]
  %s4 = sld [smem:[#allocation0]]
  $region45: #{tpu_custom_call.1} parent=0
    _
  %s6 = ssub.s32 1, %s4
  %s7 = scalar_select 0, %s6, %s4
  $region1: #{tpu_custom_call.1} parent=0
    #allocation2 [shape = 'u8[16384]{0}', space=vmem, size = 0x4000, scoped, tag = 'output window, operand 0']
    #allocation3 [shape = 's32[2]{0}', space=sflag, size = 0x8, scoped, tag = 'scoped memory for tpu_custom_call.1']
    %8 = vsyncpa [#allocation3], 0
    %s9 = scalar_lea.sflag [#allocation3], 1
    %10 = vsyncpa %s9, 0
    loop: start=0, step=1, limit=4
    $region2: #{tpu_custom_call.1} parent=1 // loop_pre_header
      _
    $region3: #{tpu_custom_call.1} parent=1 // loop_header
      %s12 = sphi 0, %s16
      %p13 = scmp.ge.s32.totalorder %s12, 4
      %s19 = sphi 0, %s31
      %s20 = sphi 0, %s27
      %s21 = sphi 0, %s19
      %s22 = sphi 0, %s20
      %s23 = sphi 0, %s21
      %s24 = sphi 0, %s22
      %s36 = sphi 0, %s38
      %s39 = sphi 0, %s36
      %s40 = sphi 0, %s39
      %s56 = sphi 0, %s40
      %s60 = sphi 0, %s60
      %s62 = sphi 0, %s60
      %s63 = sphi 0, %s62
      %s77 = sphi 0, %s63
      %s81 = sphi 0, %s81
      %s83 = sphi 0, %s81
      %s84 = sphi 0, %s83
      %s98 = sphi 0, %s84
      %s106 = sphi 0, %s108
      %s109 = sphi 0, %s106
      %s110 = sphi 0, %s109
      %s126 = sphi 0, %s110
    $region4: #{tpu_custom_call.1} parent=1 // loop_header_branch
      %15 = sbr.rel (%p13) target = $region8
    $region5: #{tpu_custom_call.1} parent=1 // loop_body
      %s17 = ssub.s32 %s12, 1
      %s18 = ssub.s32 %s12, 2
      %s25 = sadd.s32 1, %s20
      %p26 = scmp.ge.s32.totalorder %s25, 1
      %s27 = scalar_select %p26, 0, %s25
      %s28 = sadd.s32 1, %s19
      %s29 = scalar_select %p26, %s28, %s19
      %p30 = scmp.ge.s32.totalorder %s29, 2
      %s31 = scalar_select %p30, 0, %s29
      %s32 = ssub.s32 %s19, %s31
      %s33 = ssub.s32 %s20, %s27
      %s34 = sor.u32 %s32, %s33
      %p35 = scmp.eq.s32.totalorder %s34, 0
      %s37 = sadd.s32 %s36, 1
      %s38 = scalar_select %p35, %s36, %s37
      %p41 = pneg %p35
      %p42 = scmp.eq.s32.totalorder %s12, 1
      %p43 = por %p41, %p42
      %p44 = scmp.ne.s32.totalorder %s36, %s39
      %p45 = scmp.eq.s32.totalorder %s12, 0
      %p46 = por %p44, %p45
      %p47 = scmp.ne.s32.totalorder %s36, %s39
      %p48 = scmp.eq.s32.totalorder %s17, 1
      %p49 = por %p47, %p48
      %p50 = scmp.ne.s32.totalorder %s39, %s40
      %p51 = scmp.eq.s32.totalorder %s17, 0
      %p52 = por %p50, %p51
      %p53 = scmp.ne.s32.totalorder %s39, %s40
      %p54 = scmp.eq.s32.totalorder %s18, 1
      %p55 = por %p53, %p54
      %p57 = scmp.ne.s32.totalorder %s40, %s56
      %p58 = scmp.eq.s32.totalorder %s18, 0
      %p59 = por %p57, %p58
      %s61 = sadd.s32 %s60, 1
      %p64 = scmp.eq.s32.totalorder %s12, 1
      %p65 = scmp.ne.s32.totalorder %s60, %s62
      %p66 = scmp.eq.s32.totalorder %s12, 0
      %p67 = por %p65, %p66
      %p68 = scmp.ne.s32.totalorder %s60, %s62
      %p69 = scmp.eq.s32.totalorder %s17, 1
      %p70 = por %p68, %p69
      %p71 = scmp.ne.s32.totalorder %s62, %s63
      %p72 = scmp.eq.s32.totalorder %s17, 0
      %p73 = por %p71, %p72
      %p74 = scmp.ne.s32.totalorder %s62, %s63
      %p75 = scmp.eq.s32.totalorder %s18, 1
      %p76 = por %p74, %p75
      %p78 = scmp.ne.s32.totalorder %s63, %s77
      %p79 = scmp.eq.s32.totalorder %s18, 0
      %p80 = por %p78, %p79
      %s82 = sadd.s32 %s81, 1
      %p85 = scmp.eq.s32.totalorder %s12, 1
      %p86 = scmp.ne.s32.totalorder %s81, %s83
      %p87 = scmp.eq.s32.totalorder %s12, 0
      %p88 = por %p86, %p87
      %p89 = scmp.ne.s32.totalorder %s81, %s83
      %p90 = scmp.eq.s32.totalorder %s17, 1
      %p91 = por %p89, %p90
      %p92 = scmp.ne.s32.totalorder %s83, %s84
      %p93 = scmp.eq.s32.totalorder %s17, 0
      %p94 = por %p92, %p93
      %p95 = scmp.ne.s32.totalorder %s83, %s84
      %p96 = scmp.eq.s32.totalorder %s18, 1
      %p97 = por %p95, %p96
      %p99 = scmp.ne.s32.totalorder %s84, %s98
      %p100 = scmp.eq.s32.totalorder %s18, 0
      %p101 = por %p99, %p100
      %s102 = ssub.s32 %s19, %s31
      %s103 = ssub.s32 %s20, %s27
      %s104 = sor.u32 %s102, %s103
      %p105 = scmp.eq.s32.totalorder %s104, 0
      %s107 = sadd.s32 %s106, 1
      %s108 = scalar_select %p105, %s106, %s107
      %p111 = pneg %p105
      %p112 = scmp.eq.s32.totalorder %s12, 1
      %p113 = por %p111, %p112
      %p114 = scmp.ne.s32.totalorder %s106, %s109
      %p115 = scmp.eq.s32.totalorder %s12, 0
      %p116 = por %p114, %p115
      %p117 = scmp.ne.s32.totalorder %s106, %s109
      %p118 = scmp.eq.s32.totalorder %s17, 1
      %p119 = por %p117, %p118
      %p120 = scmp.ne.s32.totalorder %s109, %s110
      %p121 = scmp.eq.s32.totalorder %s17, 0
      %p122 = por %p120, %p121
      %p123 = scmp.ne.s32.totalorder %s109, %s110
      %p124 = scmp.eq.s32.totalorder %s18, 1
      %p125 = por %p123, %p124
      %p127 = scmp.ne.s32.totalorder %s110, %s126
      %p128 = scmp.eq.s32.totalorder %s18, 0
      %p129 = por %p127, %p128
      %p130 = scmp.le.s32.totalorder 1, %s12
      %p131 = scmp.lt.s32.totalorder %s12, 3
      %p132 = pnand %p130, %p131
      %p133 = pneg %p132
      // Predicated region
      $region9: #{tpu_custom_call.1} parent=5 // pred_check
        _
      $region10: #{tpu_custom_call.1} parent=5 // pred_check_branch
        %135 = sbr.rel (%p132) target = $region12
      $region11: #{tpu_custom_call.1} parent=5 // pred_region
        %s136 = ssub.s32 %s12, 1
        // Predicated region
        $region13: #{tpu_custom_call.1} parent=11 // pred_check
          %p137 = pneg %p73
        $region14: #{tpu_custom_call.1} parent=11 // pred_check_branch
          %139 = sbr.rel (%p137) target = $region16
        $region15: #{tpu_custom_call.1} parent=11 // pred_region
          _
        $region16: #{tpu_custom_call.1} parent=11 // pred_fallthru
          _
        // Predicated region
        $region17: #{tpu_custom_call.1} parent=11 // pred_check
          %p140 = pneg %p94
        $region18: #{tpu_custom_call.1} parent=11 // pred_check_branch
          %142 = sbr.rel (%p140) target = $region20
        $region19: #{tpu_custom_call.1} parent=11 // pred_region
          _
        $region20: #{tpu_custom_call.1} parent=11 // pred_fallthru
          _
      $region12: #{tpu_custom_call.1} parent=5 // pred_fallthru
        _
      %p143 = scmp.lt.s32.totalorder %s12, 2
      // Predicated region
      $region21: #{tpu_custom_call.1} parent=5 // pred_check
        %p144 = pneg %p143
      $region22: #{tpu_custom_call.1} parent=5 // pred_check_branch
        %146 = sbr.rel (%p144) target = $region24
      $region23: #{tpu_custom_call.1} parent=5 // pred_region
        // Predicated region
        $region25: #{tpu_custom_call.1} parent=23 // pred_check
          %p147 = pneg %p46
        $region26: #{tpu_custom_call.1} parent=23 // pred_check_branch
          %149 = sbr.rel (%p147) target = $region28
        $region27: #{tpu_custom_call.1} parent=23 // pred_region
          %s150 = smul.u32 2, %s20
          %p151 = scmp.lt.s32.totalorder %s19, 1
          %s152 = scalar_select %p151, %s19, 1
          %p153 = scmp.lt.s32.totalorder %s150, 1
          %s154 = scalar_select %p153, %s150, 1
          %s155 = smul.addr %s152, 2
          %s156 = sadd.s32 %s154, %s155
          %s157 = smul.addr %s156, 4
          %s158 = scalar_lea.vmem %s0, %s157
          %s159 = smul.u32 2, %s20
        $region28: #{tpu_custom_call.1} parent=23 // pred_fallthru
          _
      $region24: #{tpu_custom_call.1} parent=5 // pred_fallthru
        _
      %p160 = scmp.le.s32.totalorder 1, %s12
      %p161 = scmp.lt.s32.totalorder %s12, 3
      %p162 = pnand %p160, %p161
      %p163 = pneg %p162
      // Predicated region
      $region29: #{tpu_custom_call.1} parent=5 // pred_check
        _
      $region30: #{tpu_custom_call.1} parent=5 // pred_check_branch
        %165 = sbr.rel (%p162) target = $region32
      $region31: #{tpu_custom_call.1} parent=5 // pred_region
        %s166 = ssub.s32 %s12, 1
        %s167 = smul.u32 2, %s22
        %p168 = scmp.lt.s32.totalorder %s21, 1
        %s169 = scalar_select %p168, %s21, 1
        %p170 = scmp.lt.s32.totalorder %s167, 1
        %s171 = scalar_select %p170, %s167, 1
        %s172 = smul.addr %s169, 2
        %s173 = sadd.s32 %s171, %s172
        %s174 = smul.addr %s173, 4
        %s175 = scalar_lea.vmem %s0, %s174
        %p176 = pneg %p52
        %p177 = pneg %p49
        %p178 = pneg %p73
        %p179 = pneg %p70
        %p180 = pneg %p94
        %p181 = pneg %p91
        %p182 = pneg %p122
        %p183 = pneg %p119
        %s184 = sand.u32 %s109, 1
        %s185 = scalar_lea.sflag [#allocation3], %s184
        %s186 = sand.u32 %s109, 1
        %s187 = smul.addr %s186, 16
        %s188 = scalar_lea.vmem [#allocation2], %s187
        %s189 = smul.u32 2, %s22
        %p190 = scmp.lt.s32.totalorder %s21, 1
        %s191 = scalar_select %p190, %s21, 1
        %p192 = scmp.lt.s32.totalorder %s189, 1
        %s193 = scalar_select %p192, %s189, 1
        %s194 = smul.addr %s191, 2
        %s195 = sadd.s32 %s193, %s194
        %s196 = smul.addr %s195, 4
        %s197 = scalar_lea.vmem %s0, %s196
        %s198 = smul.u32 2, %s22
        %s199 = smul.u32 2, %s22
        %v200 = vld [vmem:[%s197] sm:$0xff]
        %v201 = vld [vmem:[%s1] sm:$0xff]
        %v202 = vld [vmem:[%s2] sm:$0xff]
        %204 = vset.pattern.permute.xlu0 0
        %205 = vperm.xlu0 %204, %v202
        %v206 = vpop.permute.xlu0 %205
        %v209 = vcombine.high %v200, %v200
        %vm210 = vcmask 31744
        %v212 = vsel %vm210, %v201, 0
        %vm214 = vcmask 1043456
        %v215 = vsel %vm214, %v200, 0
        %v217 = vsel %vm214, %v209, 0
        %219 = vmatprep.subr.mxu0 %v217
        %220 = vmatpush1.msra.mxu0 %v215
        %221 = vmatprep.subr.mxu0 0.0
        %222 = vmatpush1.msra.mxu0 0.0
        %223 = vmatprep.subr.mxu0 0.0
        %224 = vmatpush1.msra.mxu0 0.0
        %225 = vmatprep.subr.mxu0 0.0
        %226 = vmatpush1.msra.mxu0 0.0
        %227 = vmatprep.subr.mxu0 0.0
        %228 = vmatpush1.msra.mxu0 0.0
        %229 = vmatprep.subr.mxu0 0.0
        %230 = vmatpush1.msra.mxu0 0.0
        %231 = vmatprep.subr.mxu0 0.0
        %232 = vmatpush1.msra.mxu0 0.0
        %233 = vmatprep.subr.mxu0 0.0
        %234 = vmatpush1.msra.mxu0 0.0
        %235 = vmatprep.subr.mxu0 0.0
        %236 = vmatpush1.msra.mxu0 0.0
        %237 = vmatprep.subr.mxu0 0.0
        %238 = vmatpush1.msra.mxu0 0.0
        %239 = vmatprep.subr.mxu0 0.0
        %240 = vmatpush1.msra.mxu0 0.0
        %241 = vmatprep.subr.mxu0 0.0
        %242 = vmatpush1.msra.mxu0 0.0
        %243 = vmatprep.subr.mxu0 0.0
        %244 = vmatpush1.msra.mxu0 0.0
        %245 = vmatprep.subr.mxu0 0.0
        %246 = vmatpush1.msra.mxu0 0.0
        %247 = vmatprep.subr.mxu0 0.0
        %248 = vmatpush1.msra.mxu0 0.0
        %249 = vmatprep.subr.mxu0 0.0
        %250 = vmatpush1.msra.mxu0 0.0
        %251 = vmatprep.subr.mxu0 0.0
        %252 = vmatpush1.msra.mxu0 0.0
        %253 = vmatprep.subr.mxu0 0.0
        %254 = vmatpush1.msra.mxu0 0.0
        %255 = vmatprep.subr.mxu0 0.0
        %256 = vmatpush1.msra.mxu0 0.0
        %257 = vmatprep.subr.mxu0 0.0
        %258 = vmatpush1.msra.mxu0 0.0
        %259 = vmatprep.subr.mxu0 0.0
        %260 = vmatpush1.msra.mxu0 0.0
        %261 = vmatprep.subr.mxu0 0.0
        %262 = vmatpush1.msra.mxu0 0.0
        %263 = vmatprep.subr.mxu0 0.0
        %264 = vmatpush1.msra.mxu0 0.0
        %265 = vmatprep.subr.mxu0 0.0
        %266 = vmatpush1.msra.mxu0 0.0
        %267 = vmatprep.subr.mxu0 0.0
        %268 = vmatpush1.msra.mxu0 0.0
        %269 = vmatprep.subr.mxu0 0.0
        %270 = vmatpush1.msra.mxu0 0.0
        %271 = vmatprep.subr.mxu0 0.0
        %272 = vmatpush1.msra.mxu0 0.0
        %273 = vmatprep.subr.mxu0 0.0
        %274 = vmatpush1.msra.mxu0 0.0
        %275 = vmatprep.subr.mxu0 0.0
        %276 = vmatpush1.msra.mxu0 0.0
        %277 = vmatprep.subr.mxu0 0.0
        %278 = vmatpush1.msra.mxu0 0.0
        %279 = vmatprep.subr.mxu0 0.0
        %280 = vmatpush1.msra.mxu0 0.0
        %281 = vmatprep.subr.mxu0 0.0
        %282 = vmatpush1.msra.mxu0 0.0
        %283 = vmatprep.mubr.f32.mxu0 0.0
        %284 = vmatmul.mubr.f32.gmra.mrb[0].mxu0 %v212
        %v285 = vpop.f32.mrb[0].mxu0
        %v286 = vadd.f32 %v206, %v285
        %v287 = vpop.f32.mrb[0].mxu0
        %v288 = vadd.f32 %v206, %v287
        %289 = vdwg.mxu0
        %v290 = vmul.f32 %v286, %v286
        %v291 = vmul.f32 %v288, %v288
        %v292 = vrot.slane %v290, 4
        %v293 = vadd.f32 %v290, %v292
        %v294 = vrot.slane %v293, 2
        %v295 = vadd.f32 %v293, %v294
        %v296 = vrot.slane %v295, 1
        %v297 = vadd.f32 %v295, %v296
        %v298 = vrot.slane %v291, 4
        %v299 = vadd.f32 %v291, %v298
        %v300 = vrot.slane %v299, 2
        %v301 = vadd.f32 %v299, %v300
        %v302 = vrot.slane %v301, 1
        %v303 = vadd.f32 %v301, %v302
        %v304 = vadd.f32 %v297, 1e-12
        %v305 = vadd.f32 %v303, 1e-12
        %v306 = vrsqrt.pop %v304
        %v307 = vrsqrt.pop %v305
        %v308 = vmul.f32 %v286, %v306
        %v309 = vmul.f32 %v288, %v307
        %310 = vst [vmem:[%s188] sm:$0xff] %v308
        %311 = vst [vmem:[%s188 + $0x8] sm:$0xff] %v309
        %s312 = sand.u32 %s109, 1
        %s313 = scalar_lea.sflag [#allocation3], %s312
        %s314 = sand.u32 %s109, 1
        %s315 = smul.addr %s314, 16
        %s316 = scalar_lea.vmem [#allocation2], %s315
        // Predicated region
        $region33: #{tpu_custom_call.1} parent=31 // pred_check
          %p317 = pneg %p119
        $region34: #{tpu_custom_call.1} parent=31 // pred_check_branch
          %319 = sbr.rel (%p317) target = $region36
        $region35: #{tpu_custom_call.1} parent=31 // pred_region
          %s320 = smul.u32 2, %s22
          %s322 = ssub.s32 256, 256
          %323 = vsyncadd %s313, %s322
          %s324 = smul.addr %s21, 2
          %s325 = sadd.s32 %s320, %s324
          %s326 = smul.addr %s325, 128
          %s327 = scalar_lea.hbm %s3, %s326
          %s329 = sshll.u32 %s316, 4
          %s330 = int_to_ptr.vmem [resolvable:$true] %s329
          %332 = dma.vmem_to_hbm [thread:$0]  %s330, 256, %s327, %s313
        $region36: #{tpu_custom_call.1} parent=31 // pred_fallthru
          _
      $region32: #{tpu_custom_call.1} parent=5 // pred_fallthru
        _
      %p333 = scmp.le.s32.totalorder 2, %s12
      // Predicated region
      $region37: #{tpu_custom_call.1} parent=5 // pred_check
        %p334 = pneg %p333
      $region38: #{tpu_custom_call.1} parent=5 // pred_check_branch
        %336 = sbr.rel (%p334) target = $region40
      $region39: #{tpu_custom_call.1} parent=5 // pred_region
        %s337 = ssub.s32 %s12, 2
        // Predicated region
        $region41: #{tpu_custom_call.1} parent=39 // pred_check
          %p338 = pneg %p125
        $region42: #{tpu_custom_call.1} parent=39 // pred_check_branch
          %340 = sbr.rel (%p338) target = $region44
        $region43: #{tpu_custom_call.1} parent=39 // pred_region
          %s341 = sand.u32 %s110, 1
          %s342 = scalar_lea.sflag [#allocation3], %s341
          %s343 = sand.u32 %s110, 1
          %s344 = smul.addr %s343, 16
          %s345 = scalar_lea.vmem [#allocation2], %s344
          %346 = dma.done %s342, 256
        $region44: #{tpu_custom_call.1} parent=39 // pred_fallthru
          _
      $region40: #{tpu_custom_call.1} parent=5 // pred_fallthru
        _
    $region6: #{tpu_custom_call.1} parent=1 // loop_footer
      %s16 = sadd.s32 1, %s12
    $region7: #{tpu_custom_call.1} parent=1 // loop_footer_branch
      %11 = sbr.rel target = $region3
    $region8: #{tpu_custom_call.1} parent=1 // loop_exit
      _
    %347 = vsyncpa [#allocation3], 1
    %s348 = scalar_lea.sflag [#allocation3], 1
    %349 = vsyncpa %s348, 1

</llo_original>
